<compile_context>
chip_gen: v5e
topology: v5e:2x2
jax: 0.10.0
libtpu: 0.0.40
codegen_flags: <defaults>
</compile_context>

<pallas_src>
import jax
import jax.numpy as jnp
from jax.experimental import pallas as pl
from jax.experimental.pallas import tpu as pltpu

LANES = 128
ACC_ROWS = 64          # accumulator rows -> 8 independent (8,128) vregs (ILP)
SLAB_ROWS = 512        # rows folded per (unrolled) step: <=256 KiB f32 temps


def _round_up(x: int, m: int) -> int:
    return ((x + m - 1) // m) * m


def _tpu_config():
    """Return (core_splits for the leading 'parallel' axis, target block bytes)."""
    kind = ""
    try:
        dev = jax.devices()[0]
        if getattr(dev, "platform", "") == "tpu":
            kind = dev.device_kind.lower()
    except Exception:
        pass
    if "v7" in kind or "7x" in kind:
        return 2, 8 << 20          # 2 TCs/chip, ~3.2 TB/s HBM -> big blocks
    if "v6" in kind:
        return 1, 4 << 20          # single TC, ~1.4 TB/s
    if "v5e" in kind or "v5 lite" in kind or "v5lite" in kind:
        return 1, 2 << 20          # single TC, ~0.82 TB/s, 16 MiB scoped VMEM
    if "v5" in kind or "v4" in kind:
        return 2, 4 << 20          # v5p / v4 megacore
    return 1, 4 << 20              # unknown: conservative defaults


def _make_sum_kernel(row_tile: int, acc_rows: int, m_rows: int,
                     num_blocks: int, blocks_per_core: int):
    """Partial-sum kernel: each core folds its row-tiles into an
    (acc_rows, 128) vreg-shaped VPU accumulator and writes its partial once
    on its last reduction step."""

    # Static slab decomposition of one block (each slab size divides acc_rows).
    slabs = []
    off = 0
    while off < row_tile:
        size = min(SLAB_ROWS, row_tile - off)
        slabs.append((off, size))
        off += size

    def _fold(acc_ref, x_ref, slab_off, slab_rows, valid_rows=None):
        xs = x_ref[pl.ds(slab_off, slab_rows), :].astype(jnp.float32)
        if valid_rows is not None:
            # Per-row mask: (slab_rows, 1) iota broadcast across lanes by where.
            row = jax.lax.broadcasted_iota(jnp.int32, (slab_rows, 1), 0) + slab_off
            xs = jnp.where(row < valid_rows, xs, 0.0)
        acc_ref[...] += jnp.sum(xs.reshape(-1, acc_rows, LANES), axis=0)

    def kernel(x_ref, o_ref, acc_ref):
        c = pl.program_id(0)               # core split ("parallel")
        i = pl.program_id(1)               # reduction step ("arbitrary")
        n_inner = pl.num_programs(1)
        logical_block = c * blocks_per_core + i

        @pl.when(i == 0)
        def _init():
            acc_ref[...] = jnp.zeros_like(acc_ref)

        # All blocks except the (globally) last one are fully in range:
        # pure elementwise accumulation, no masking cost (hot path).
        @pl.when(logical_block < num_blocks - 1)
        def _accum_full():
            for soff, srows in slabs:
                _fold(acc_ref, x_ref, soff, srows)

        # Last logical block plus any over-covering steps (clamped re-reads):
        # mask rows past the valid data; over-cover steps get an all-False
        # mask and contribute exactly zero (cold path).
        @pl.when(logical_block >= num_blocks - 1)
        def _accum_masked():
            valid_rows = m_rows - logical_block * row_tile
            for soff, srows in slabs:
                _fold(acc_ref, x_ref, soff, srows, valid_rows)

        @pl.when(i == n_inner - 1)
        def _finalize():
            o_ref[...] = acc_ref[...].reshape(1, acc_rows, LANES)

    return kernel


def train_rate_loss(self_informations: jax.Array) -> jax.Array:
    """Pallas equivalent of TrainRateLoss.forward: mean over all elements."""
    n_elems = self_informations.size
    orig_dtype = self_informations.dtype
    itemsize = jnp.dtype(orig_dtype).itemsize

    # Flatten (free reshape). Only a <128-element zero pad when numel % 128
    # != 0; in-kernel masking handles the rest of the ragged tail.
    flat = self_informations.reshape(-1)
    rem = n_elems % LANES
    if rem:
        flat = jnp.pad(flat, (0, LANES - rem))
    x2d = flat.reshape(-1, LANES)
    m_rows = x2d.shape[0]

    num_cores, block_bytes = _tpu_config()

    # Size the row tile by BYTES so low-precision inputs still get multi-MiB
    # blocks; round to 64 rows (multiple of every dtype's native 8/16/32
    # sublane packing).  Tiny inputs fall back to the packing itself.
    pack = max(8, 32 // itemsize)                       # 8 f32, 16 bf16, 32 int8
    row_align = ACC_ROWS if m_rows >= ACC_ROWS else pack
    row_cap = max(ACC_ROWS, (block_bytes // (LANES * itemsize)) // ACC_ROWS * ACC_ROWS)
    row_tile = min(row_cap, _round_up(m_rows, row_align))
    acc_rows = ACC_ROWS if row_tile % ACC_ROWS == 0 else row_align

    num_blocks = pl.cdiv(m_rows, row_tile)
    blocks_per_core = pl.cdiv(num_blocks, num_cores)

    kernel = _make_sum_kernel(row_tile, acc_rows, m_rows, num_blocks,
                              blocks_per_core)

    def x_index_map(c, i):
        # Clamp so over-covering steps re-read the last in-range block (their
        # contribution is masked to zero inside the kernel).
        return (jnp.minimum(c * blocks_per_core + i, num_blocks - 1), 0)

    tile_bytes = row_tile * LANES * itemsize
    vmem_limit = int(min(2 * tile_bytes + (8 << 20), 32 << 20))

    partials = pl.pallas_call(
        kernel,
        out_shape=jax.ShapeDtypeStruct((num_cores, acc_rows, LANES),
                                       jnp.float32),
        grid_spec=pltpu.PrefetchScalarGridSpec(
            num_scalar_prefetch=0,
            grid=(num_cores, blocks_per_core),
            in_specs=[pl.BlockSpec((row_tile, LANES), x_index_map)],
            out_specs=pl.BlockSpec((1, acc_rows, LANES),
                                   lambda c, i: (c, 0, 0)),
            scratch_shapes=[pltpu.VMEM((acc_rows, LANES), jnp.float32)],
        ),
        compiler_params=pltpu.CompilerParams(
            dimension_semantics=("parallel", "arbitrary"),
            vmem_limit_bytes=vmem_limit,
        ),
        cost_estimate=pl.CostEstimate(
            flops=n_elems,
            transcendentals=0,
            bytes_accessed=x2d.size * itemsize
            + num_cores * acc_rows * LANES * 4,
        ),
    )(x2d)

    # Tiny epilogue: one cross-lane/sublane reduce over the f32 partials,
    # then divide by the original (un-padded) element count.
    bpp_rate = jnp.sum(partials) / n_elems
    # Match torch.mean dtype semantics (result in the input dtype).
    # TODO(synk): consider returning float32 unconditionally for training-loss use.
    return bpp_rate.astype(orig_dtype)


if __name__ == "__main__":
    key = jax.random.PRNGKey(0)

    # 1) Self-information map, e.g. per-pixel/-channel bits from an entropy model.
    x = jax.random.uniform(key, (2, 4, 16, 16), dtype=jnp.float32,
                           minval=0.0, maxval=8.0)
    out = train_rate_loss(x)
    jax.block_until_ready(out)
    assert jnp.allclose(out, jnp.mean(x), rtol=1e-6, atol=1e-6), (out, jnp.mean(x))

    # 2) Element count not a multiple of 128 (exercises the lane pad).
    k1, k2 = jax.random.split(key)
    x2 = jax.random.uniform(k1, (2, 4, 15, 17), dtype=jnp.float32,
                            minval=0.0, maxval=8.0)
    out2 = train_rate_loss(x2)
    jax.block_until_ready(out2)
    assert jnp.allclose(out2, jnp.mean(x2), rtol=1e-6, atol=1e-6), (out2, jnp.mean(x2))

    # 3) Multi-block ragged case (exercises accumulation + masked tail).
    x3 = jax.random.uniform(k2, (4, 8, 250, 259), dtype=jnp.float32,
                            minval=0.0, maxval=8.0)
    out3 = train_rate_loss(x3)
    jax.block_until_ready(out3)
    assert jnp.allclose(out3, jnp.mean(x3), rtol=2e-5, atol=1e-5), (out3, jnp.mean(x3))

    print("KERNEL_OK")
</pallas_src>

<mosaic_0001>
module attributes {stable_mosaic.version = 11 : i64} {
  func.func @kernel(%arg0: i32, %arg1: i32, %arg2: memref<16x128xf32, #tpu.memory_space<vmem>>, %arg3: memref<1x8x128xf32, #tpu.memory_space<vmem>>, %arg4: memref<8x128xf32, #tpu.memory_space<vmem>>) attributes {dimension_semantics = [#tpu.dimension_semantics<parallel>, #tpu.dimension_semantics<arbitrary>], iteration_bounds = array<i64: 1, 1>, scalar_prefetch = 0 : i64, scratch_operands = 1 : i64, tpu.core_type = #tpu.core_type<tc>, window_params = [{transform_indices = @transform_0, window_bounds = array<i64: 16, 128>}, {transform_indices = @transform_1, window_bounds = array<i64: 1, 8, 128>}]} {
    %c1_i32 = arith.constant 1 : i32
    %0 = arith.muli %arg0, %c1_i32 : i32
    %1 = arith.addi %0, %arg1 : i32
    %c0_i32 = arith.constant 0 : i32
    %2 = arith.cmpi eq, %arg1, %c0_i32 : i32
    %3 = arith.extui %2 : i1 to i32
    %c0_i32_0 = arith.constant 0 : i32
    %4 = arith.cmpi ne, %3, %c0_i32_0 : i32
    scf.if %4 {
      %cst = arith.constant 0.000000e+00 : f32
      %14 = vector.broadcast %cst : f32 to vector<8x128xf32>
      %c0 = arith.constant 0 : index
      %c0_7 = arith.constant 0 : index
      %15 = vector.load %arg4[%c0, %c0_7] : memref<8x128xf32, #tpu.memory_space<vmem>>, vector<8x128xf32>
      tpu.vector_store %arg4[%c0, %c0_7], %14 {strides = array<i32>} : memref<8x128xf32, #tpu.memory_space<vmem>>, vector<8x128xf32>,
    } else {
    }
    %c0_i32_1 = arith.constant 0 : i32
    %5 = arith.cmpi slt, %1, %c0_i32_1 : i32
    %6 = arith.extui %5 : i1 to i32
    %c0_i32_2 = arith.constant 0 : i32
    %7 = arith.cmpi ne, %6, %c0_i32_2 : i32
    scf.if %7 {
      %c0 = arith.constant 0 : index
      %c0_7 = arith.constant 0 : index
      %14 = vector.load %arg2[%c0, %c0_7] : memref<16x128xf32, #tpu.memory_space<vmem>>, vector<16x128xf32>
      %c0_8 = arith.constant 0 : index
      %c0_9 = arith.constant 0 : index
      %15 = vector.load %arg4[%c0_8, %c0_9] : memref<8x128xf32, #tpu.memory_space<vmem>>, vector<8x128xf32>
      %16 = vector.shape_cast %14 : vector<16x128xf32> to vector<2x8x128xf32>
      %cst = arith.constant dense<0.000000e+00> : vector<8x128xf32>
      %17 = vector.multi_reduction <add>, %16, %cst [0] : vector<2x8x128xf32> to vector<8x128xf32>
      %18 = arith.addf %15, %17 : vector<8x128xf32>
      %c0_10 = arith.constant 0 : index
      %c0_11 = arith.constant 0 : index
      %19 = vector.load %arg4[%c0_10, %c0_11] : memref<8x128xf32, #tpu.memory_space<vmem>>, vector<8x128xf32>
      tpu.vector_store %arg4[%c0_10, %c0_11], %18 {strides = array<i32>} : memref<8x128xf32, #tpu.memory_space<vmem>>, vector<8x128xf32>,
    } else {
    }
    %c0_i32_3 = arith.constant 0 : i32
    %8 = arith.cmpi sge, %1, %c0_i32_3 : i32
    %9 = arith.extui %8 : i1 to i32
    %c0_i32_4 = arith.constant 0 : i32
    %10 = arith.cmpi ne, %9, %c0_i32_4 : i32
    scf.if %10 {
      %c16_i32 = arith.constant 16 : i32
      %14 = arith.muli %1, %c16_i32 : i32
      %c16_i32_7 = arith.constant 16 : i32
      %15 = arith.subi %c16_i32_7, %14 : i32
      %c0 = arith.constant 0 : index
      %c0_8 = arith.constant 0 : index
      %16 = vector.load %arg2[%c0, %c0_8] : memref<16x128xf32, #tpu.memory_space<vmem>>, vector<16x128xf32>
      %17 = tpu.iota {dimensions = array<i32: 0>} : vector<16x1xi32>
      %c0_i32_9 = arith.constant 0 : i32
      %18 = vector.broadcast %c0_i32_9 : i32 to vector<16x1xi32>
      %19 = arith.addi %17, %18 : vector<16x1xi32>
      %20 = vector.broadcast %15 : i32 to vector<16x1xi32>
      %21 = arith.cmpi slt, %19, %20 : vector<16x1xi32>
      %cst = arith.constant 0.000000e+00 : f32
      %22 = vector.shape_cast %21 : vector<16x1xi1> to vector<16x1xi1>
      %23 = vector.broadcast %22 : vector<16x1xi1> to vector<16x128xi1>
      %24 = vector.broadcast %cst : f32 to vector<16x128xf32>
      %25 = arith.select %23, %16, %24 : vector<16x128xi1>, vector<16x128xf32>
      %c0_10 = arith.constant 0 : index
      %c0_11 = arith.constant 0 : index
      %26 = vector.load %arg4[%c0_10, %c0_11] : memref<8x128xf32, #tpu.memory_space<vmem>>, vector<8x128xf32>
      %27 = vector.shape_cast %25 : vector<16x128xf32> to vector<2x8x128xf32>
      %cst_12 = arith.constant dense<0.000000e+00> : vector<8x128xf32>
      %28 = vector.multi_reduction <add>, %27, %cst_12 [0] : vector<2x8x128xf32> to vector<8x128xf32>
      %29 = arith.addf %26, %28 : vector<8x128xf32>
      %c0_13 = arith.constant 0 : index
      %c0_14 = arith.constant 0 : index
      %30 = vector.load %arg4[%c0_13, %c0_14] : memref<8x128xf32, #tpu.memory_space<vmem>>, vector<8x128xf32>
      tpu.vector_store %arg4[%c0_13, %c0_14], %29 {strides = array<i32>} : memref<8x128xf32, #tpu.memory_space<vmem>>, vector<8x128xf32>,
    } else {
    }
    %c0_i32_5 = arith.constant 0 : i32
    %11 = arith.cmpi eq, %arg1, %c0_i32_5 : i32
    %12 = arith.extui %11 : i1 to i32
    %c0_i32_6 = arith.constant 0 : i32
    %13 = arith.cmpi ne, %12, %c0_i32_6 : i32
    scf.if %13 {
      %c0 = arith.constant 0 : index
      %c0_7 = arith.constant 0 : index
      %14 = vector.load %arg4[%c0, %c0_7] : memref<8x128xf32, #tpu.memory_space<vmem>>, vector<8x128xf32>
      %15 = vector.shape_cast %14 : vector<8x128xf32> to vector<1x8x128xf32>
      %c0_8 = arith.constant 0 : index
      %c0_9 = arith.constant 0 : index
      %c0_10 = arith.constant 0 : index
      %16 = vector.load %arg3[%c0_8, %c0_9, %c0_10] : memref<1x8x128xf32, #tpu.memory_space<vmem>>, vector<1x8x128xf32>
      tpu.vector_store %arg3[%c0_8, %c0_9, %c0_10], %15 {strides = array<i32>} : memref<1x8x128xf32, #tpu.memory_space<vmem>>, vector<1x8x128xf32>,
    } else {
    }
    return
  }
  func.func @transform_0(%arg0: i32, %arg1: i32) -> (i32, i32) {
    %c1_i32 = arith.constant 1 : i32
    %0 = arith.muli %arg0, %c1_i32 : i32
    %1 = arith.addi %0, %arg1 : i32
    %c0_i32 = arith.constant 0 : i32
    %2 = arith.minsi %1, %c0_i32 : i32
    %c0_i32_0 = arith.constant 0 : i32
    %c0_i32_1 = arith.constant 0 : i32
    return %2, %c0_i32_0 : i32, i32
  }
  func.func @transform_1(%arg0: i32, %arg1: i32) -> (i32, i32, i32) {
    %c0_i32 = arith.constant 0 : i32
    %c0_i32_0 = arith.constant 0 : i32
    %c0_i32_1 = arith.constant 0 : i32
    return %arg0, %c0_i32, %c0_i32_0 : i32, i32, i32
  }
}

</mosaic_0001>

<llo_original>
// kernel: tpu_custom_call.1
$region0: #{tpu_custom_call.1}
  #allocation0 [shape = 'u32[]', space=smem, size = 0x4, offset = 0x4, fixed_abs, tag = 'smem constant byte address 0x4 - core index']
  #allocation1 [shape = 'u32[72,128]{1,0:T(1,128)}', space=vmem, size = 0x9000, scoped, tag = 'internal scratch']
  #allocation2 [shape = 'f32[8,128]{1,0:T(8,128)}', space=vmem, size = 0x1000, scoped, tag = 'scratch operand']
  %s0 = inlined_call_operand.hbm [shape: f32[16,128], index: 0, kind: input, shape index: {}]
  %s1 = inlined_call_operand.hbm [shape: f32[1,8,128], index: 1, kind: output, shape index: {}]
  %s2 = sld [smem:[#allocation0]]
  $region34: #{tpu_custom_call.1} parent=0
    _
  %s4 = ssub.s32 1, %s2
  %s5 = scalar_select 0, %s4, %s2
  $region1: #{tpu_custom_call.1} parent=0
    #allocation3 [shape = 'u8[8192]{0}', space=vmem, size = 0x2000, scoped, tag = 'input window, operand 0, single buffered']
    #allocation4 [shape = 's32[1]{0}', space=sflag, size = 0x4, scoped, tag = 'scoped memory for tpu_custom_call.1']
    #allocation5 [shape = 's32[1]{0}', space=sflag, size = 0x4, scoped, tag = 'scoped memory for tpu_custom_call.1']
    #allocation6 [shape = 'u8[4096]{0}', space=vmem, size = 0x1000, scoped, tag = 'output window, operand 0, single buffered']
    %6 = vsyncpa [#allocation4], 0
    %7 = vsyncpa [#allocation5], 0
    // Predicated region
    $region2: #{tpu_custom_call.1} parent=1 // pred_check
      _
    $region3: #{tpu_custom_call.1} parent=1 // pred_check_branch
      %9 = sbr.rel (0) target = $region5
    $region4: #{tpu_custom_call.1} parent=1 // pred_region
      %s10 = sadd.s32 0, 0
      %p11 = scmp.lt.s32.totalorder %s10, 0
      %s12 = scalar_select %p11, %s10, 0
      %s13 = smul.u32 2, %s12
      %15 = vsyncadd [#allocation4], 0
      %s16 = smul.addr %s13, 8
      %s17 = scalar_lea.hbm %s0, %s16
      %s18 = sshll.u32 %s17, 4
      %s19 = int_to_ptr.hbm [resolvable:$true] %s18
      %s20 = sshll.u32 [#allocation3], 4
      %s21 = int_to_ptr.vmem [resolvable:$true] %s20
      %26 = dma.hbm_to_vmem [thread:$0]  %s19, 256, %s21, [#allocation4], 128, 128, 8
    $region5: #{tpu_custom_call.1} parent=1 // pred_fallthru
      _
    // Predicated region
    $region6: #{tpu_custom_call.1} parent=1 // pred_check
      _
    $region7: #{tpu_custom_call.1} parent=1 // pred_check_branch
      %28 = sbr.rel (0) target = $region9
    $region8: #{tpu_custom_call.1} parent=1 // pred_region
      %30 = dma.done [#allocation4], 256
    $region9: #{tpu_custom_call.1} parent=1 // pred_fallthru
      _
    %s31 = sadd.s32 0, 0
    %p32 = scmp.lt.s32.totalorder %s31, 0
    %s33 = scalar_select %p32, %s31, 0
    %s34 = smul.u32 2, %s33
    %s35 = sadd.s32 0, 0
    %p36 = scmp.eq.s32.totalorder 0, 0
    // Predicated region
    $region10: #{tpu_custom_call.1} parent=1 // pred_check
      %p37 = pneg %p36
    $region11: #{tpu_custom_call.1} parent=1 // pred_check_branch
      %39 = sbr.rel (%p37) target = $region13
    $region12: #{tpu_custom_call.1} parent=1 // pred_region
      %40 = vst [vmem:[#allocation2] sm:$0xff] 0.0
    $region13: #{tpu_custom_call.1} parent=1 // pred_fallthru
      _
    %p41 = scmp.lt.s32.totalorder %s35, 0
    // Predicated region
    $region14: #{tpu_custom_call.1} parent=1 // pred_check
      %p42 = pneg %p41
    $region15: #{tpu_custom_call.1} parent=1 // pred_check_branch
      %44 = sbr.rel (%p42) target = $region17
    $region16: #{tpu_custom_call.1} parent=1 // pred_region
      %v45 = vld [vmem:[#allocation3] sm:$0xff]
      %v46 = vld [vmem:[#allocation3 + $0x8] sm:$0xff]
      %v47 = vld [vmem:[#allocation2] sm:$0xff]
      %v48 = vadd.f32 %v45, %v46
      %v49 = vadd.f32 %v47, %v48
      %50 = vst [vmem:[#allocation2] sm:$0xff] %v49
    $region17: #{tpu_custom_call.1} parent=1 // pred_fallthru
      _
    %p51 = scmp.ge.s32.totalorder %s35, 0
    // Predicated region
    $region18: #{tpu_custom_call.1} parent=1 // pred_check
      %p52 = pneg %p51
    $region19: #{tpu_custom_call.1} parent=1 // pred_check_branch
      %54 = sbr.rel (%p52) target = $region21
    $region20: #{tpu_custom_call.1} parent=1 // pred_region
      %s55 = smul.u32 %s35, 16
      %s56 = ssub.s32 16, %s55
      %v57 = vld [vmem:[#allocation3] sm:$0xff]
      %v58 = vld [vmem:[#allocation3 + $0x8] sm:$0xff]
      %v59 = vlaneseq
      %v60 = vshrl.u32 %v59, 7
      %v61 = vadd.s32 %v60, 8
      %v62 = vstv %s56
      %vm63 = vcmp.lt.s32.totalorder %v60, %v62
      %vm64 = vcmp.lt.s32.totalorder %v61, %v62
      %v65 = vsel %vm63, 1, 0
      %v66 = vsel %vm64, 1, 0
      %vm67 = vcmp.eq.s32.totalorder %v65, 1
      %vm68 = vcmp.eq.s32.totalorder %v66, 1
      %v69 = vsel %vm67, %v57, 0.0
      %v70 = vsel %vm68, %v58, 0.0
      %v71 = vld [vmem:[#allocation2] sm:$0xff]
      %v72 = vadd.f32 %v69, %v70
      %v73 = vadd.f32 %v71, %v72
      %74 = vst [vmem:[#allocation2] sm:$0xff] %v73
    $region21: #{tpu_custom_call.1} parent=1 // pred_fallthru
      _
    // Predicated region
    $region22: #{tpu_custom_call.1} parent=1 // pred_check
      %p75 = pneg %p36
    $region23: #{tpu_custom_call.1} parent=1 // pred_check_branch
      %77 = sbr.rel (%p75) target = $region25
    $region24: #{tpu_custom_call.1} parent=1 // pred_region
      %v78 = vld [vmem:[#allocation2] sm:$0xff]
      %79 = vst [vmem:[#allocation6] sm:$0xff] %v78
    $region25: #{tpu_custom_call.1} parent=1 // pred_fallthru
      _
    // Predicated region
    $region26: #{tpu_custom_call.1} parent=1 // pred_check
      _
    $region27: #{tpu_custom_call.1} parent=1 // pred_check_branch
      %81 = sbr.rel (0) target = $region29
    $region28: #{tpu_custom_call.1} parent=1 // pred_region
      %83 = vsyncadd [#allocation5], 0
      %s85 = sshll.u32 [#allocation6], 4
      %s86 = int_to_ptr.vmem [resolvable:$true] %s85
      %s87 = sshll.u32 %s1, 4
      %s88 = int_to_ptr.hbm [resolvable:$true] %s87
      %90 = dma.vmem_to_hbm [thread:$0]  %s86, 128, %s88, [#allocation5]
    $region29: #{tpu_custom_call.1} parent=1 // pred_fallthru
      _
    // Predicated region
    $region30: #{tpu_custom_call.1} parent=1 // pred_check
      _
    $region31: #{tpu_custom_call.1} parent=1 // pred_check_branch
      %92 = sbr.rel (0) target = $region33
    $region32: #{tpu_custom_call.1} parent=1 // pred_region
      %94 = dma.done [#allocation5], 128
    $region33: #{tpu_custom_call.1} parent=1 // pred_fallthru
      _
    %95 = vsyncpa [#allocation4], 1
    %96 = vsyncpa [#allocation5], 1

</llo_original>
